<compile_context>
chip_gen: v7x
topology: tpu7x:2x2x1
jax: 0.10.0
libtpu: 0.0.40
codegen_flags: <defaults>
</compile_context>

<pallas_src>
import jax
import jax.numpy as jnp
from jax.experimental import pallas as pl
from jax.experimental.pallas import tpu as pltpu


def predictor_kernel(x_ref, w1_ref, w2_ref, w3_ref, b_ref, out_ref):
    x = x_ref[...]                                    # [bm, 128]

    # Layer 1: fused fc11|fc21|fc31  -> [bm, 192]
    h = jnp.dot(x, w1_ref[...], preferred_element_type=jnp.float32)
    h = jnp.maximum(h + b_ref[0:1, :], 0.0)

    # Layer 2: block-diagonal fc12/fc22/fc32 -> [bm, 48]
    h = jnp.dot(h, w2_ref[...], preferred_element_type=jnp.float32)
    h = jnp.maximum(h + b_ref[1:2, 0:48], 0.0)

    # Layer 3: block-diagonal fc13/fc23/fc33 -> [bm, 16] = ha|rt|gd
    y = jnp.dot(h, w3_ref[...], preferred_element_type=jnp.float32)
    y = y + b_ref[2:3, 0:16]

    # sigmoid only on column 0 (the `ha` head); exp goes to the EUP slot.
    col = jax.lax.broadcasted_iota(jnp.int32, y.shape, 1)
    y = jnp.where(col == 0, jax.nn.sigmoid(y), y)
    out_ref[...] = y.astype(out_ref.dtype)


def make_params(key):
    """Deterministic parameter init mimicking nn.Linear shapes.

    PyTorch nn.Linear(in, out) stores weight [out, in]; we store the transpose
    [in, out] so the kernel can compute x @ W + b directly.
    """
    dims = {
        "fc11": (128, 64), "fc12": (64, 16), "fc13": (16, 1),
        "fc21": (128, 64), "fc22": (64, 16), "fc23": (16, 8),
        "fc31": (128, 64), "fc32": (64, 16), "fc33": (16, 7),
    }
    params = {}
    for name, (fan_in, fan_out) in dims.items():
        key, kw, kb = jax.random.split(key, 3)
        bound = 1.0 / jnp.sqrt(fan_in)
        w = jax.random.uniform(kw, (fan_in, fan_out), jnp.float32, -bound, bound)
        b = jax.random.uniform(kb, (1, fan_out), jnp.float32, -bound, bound)
        params[name] = (w, b)
    return params


def pack_params(params):
    """Pack the 9 Linear layers into 3 fused weight matrices + 1 bias slab."""
    w11, b11 = params["fc11"]; w12, b12 = params["fc12"]; w13, b13 = params["fc13"]
    w21, b21 = params["fc21"]; w22, b22 = params["fc22"]; w23, b23 = params["fc23"]
    w31, b31 = params["fc31"]; w32, b32 = params["fc32"]; w33, b33 = params["fc33"]

    # Layer 1: concat along output dim -> [128, 192]
    w1 = jnp.concatenate([w11, w21, w31], axis=1)
    # Layer 2: block-diagonal -> [192, 48]
    w2 = jnp.zeros((192, 48), jnp.float32)
    w2 = w2.at[0:64, 0:16].set(w12).at[64:128, 16:32].set(w22).at[128:192, 32:48].set(w32)
    # Layer 3: block-diagonal -> [48, 16]
    w3 = jnp.zeros((48, 16), jnp.float32)
    w3 = w3.at[0:16, 0:1].set(w13).at[16:32, 1:9].set(w23).at[32:48, 9:16].set(w33)

    b_slab = jnp.zeros((3, 192), jnp.float32)
    b_slab = b_slab.at[0:1, 0:192].set(jnp.concatenate([b11, b21, b31], axis=1))
    b_slab = b_slab.at[1:2, 0:48].set(jnp.concatenate([b12, b22, b32], axis=1))
    b_slab = b_slab.at[2:3, 0:16].set(jnp.concatenate([b13, b23, b33], axis=1))
    return w1, w2, w3, b_slab


def _round_up(n, m):
    return (n + m - 1) // m * m


def predictor_forward(x, w1, w2, w3, b_slab, *, block_b=256):
    """x: [B, 128] f32  ->  (ha [B,1], rt [B,8], gd [B,7])."""
    B = x.shape[0]
    bm = min(block_b, _round_up(B, 8))
    Bp = _round_up(B, bm)
    if Bp != B:
        x = jnp.pad(x, ((0, Bp - B), (0, 0)))

    out = pl.pallas_call(
        predictor_kernel,
        out_shape=jax.ShapeDtypeStruct((Bp, 16), jnp.float32),
        grid_spec=pltpu.PrefetchScalarGridSpec(
            num_scalar_prefetch=0,
            grid=(Bp // bm,),
            in_specs=[
                pl.BlockSpec((bm, 128), lambda i: (i, 0)),   # x: batch-tiled
                pl.BlockSpec((128, 192), lambda i: (0, 0)),  # w1: resident
                pl.BlockSpec((192, 48), lambda i: (0, 0)),   # w2: resident
                pl.BlockSpec((48, 16), lambda i: (0, 0)),    # w3: resident
                pl.BlockSpec((3, 192), lambda i: (0, 0)),    # biases: resident
            ],
            out_specs=pl.BlockSpec((bm, 16), lambda i: (i, 0)),
        ),
        compiler_params=pltpu.CompilerParams(
            dimension_semantics=("parallel",)),
    )(x, w1, w2, w3, b_slab)

    out = out[:B]
    ha = out[:, 0:1]
    rt = out[:, 1:9]
    gd = out[:, 9:16]
    return ha, rt, gd


def predictor_ref(x, params):
    """Pure-JAX reference of the PyTorch forward, for verification."""
    def mlp(x, w1, b1, w2, b2, w3, b3):
        h = jnp.maximum(x @ w1 + b1, 0.0)
        h = jnp.maximum(h @ w2 + b2, 0.0)
        return h @ w3 + b3

    ha = jax.nn.sigmoid(mlp(x, *params["fc11"], *params["fc12"], *params["fc13"]))
    rt = mlp(x, *params["fc21"], *params["fc22"], *params["fc23"])
    gd = mlp(x, *params["fc31"], *params["fc32"], *params["fc33"])
    return ha, rt, gd


if __name__ == "__main__":
    key = jax.random.PRNGKey(0)
    key, kx, kp = jax.random.split(key, 3)

    params = make_params(kp)
    w1, w2, w3, b_slab = pack_params(params)

    # Batch aligned to the sublane tile.
    B = 8
    x = jax.random.normal(kx, (B, 128), jnp.float32)
    ha, rt, gd = predictor_forward(x, w1, w2, w3, b_slab)
    jax.block_until_ready((ha, rt, gd))
    ha_r, rt_r, gd_r = predictor_ref(x, params)
    assert ha.shape == (B, 1) and rt.shape == (B, 8) and gd.shape == (B, 7)
    assert jnp.allclose(ha, ha_r, atol=1e-5, rtol=1e-5)
    assert jnp.allclose(rt, rt_r, atol=1e-5, rtol=1e-5)
    assert jnp.allclose(gd, gd_r, atol=1e-5, rtol=1e-5)

    # Ragged batch (exercises the padding path).
    B2 = 5
    x2 = jax.random.normal(jax.random.PRNGKey(1), (B2, 128), jnp.float32)
    ha2, rt2, gd2 = predictor_forward(x2, w1, w2, w3, b_slab)
    jax.block_until_ready((ha2, rt2, gd2))
    ha2_r, rt2_r, gd2_r = predictor_ref(x2, params)
    assert ha2.shape == (B2, 1) and rt2.shape == (B2, 8) and gd2.shape == (B2, 7)
    assert jnp.allclose(ha2, ha2_r, atol=1e-5, rtol=1e-5)
    assert jnp.allclose(rt2, rt2_r, atol=1e-5, rtol=1e-5)
    assert jnp.allclose(gd2, gd2_r, atol=1e-5, rtol=1e-5)

    print("KERNEL_OK")
</pallas_src>

<mosaic_0001>
module attributes {stable_mosaic.version = 11 : i64} {
  func.func @predictor_kernel(%arg0: i32, %arg1: memref<8x128xf32, #tpu.memory_space<vmem>>, %arg2: memref<128x192xf32, #tpu.memory_space<vmem>>, %arg3: memref<192x48xf32, #tpu.memory_space<vmem>>, %arg4: memref<48x16xf32, #tpu.memory_space<vmem>>, %arg5: memref<3x192xf32, #tpu.memory_space<vmem>>, %arg6: memref<8x16xf32, #tpu.memory_space<vmem>>) attributes {dimension_semantics = [#tpu.dimension_semantics<parallel>], iteration_bounds = array<i64: 1>, scalar_prefetch = 0 : i64, scratch_operands = 0 : i64, tpu.core_type = #tpu.core_type<tc>, window_params = [{transform_indices = @transform_0, window_bounds = array<i64: 8, 128>}, {pipeline_mode = #tpu.pipeline_mode<synchronous>, transform_indices = @transform_1, window_bounds = array<i64: 128, 192>}, {pipeline_mode = #tpu.pipeline_mode<synchronous>, transform_indices = @transform_2, window_bounds = array<i64: 192, 48>}, {pipeline_mode = #tpu.pipeline_mode<synchronous>, transform_indices = @transform_3, window_bounds = array<i64: 48, 16>}, {pipeline_mode = #tpu.pipeline_mode<synchronous>, transform_indices = @transform_4, window_bounds = array<i64: 3, 192>}, {transform_indices = @transform_5, window_bounds = array<i64: 8, 16>}]} {
    %c0 = arith.constant 0 : index
    %c0_0 = arith.constant 0 : index
    %0 = vector.load %arg1[%c0, %c0_0] : memref<8x128xf32, #tpu.memory_space<vmem>>, vector<8x128xf32>
    %c0_1 = arith.constant 0 : index
    %c0_2 = arith.constant 0 : index
    %1 = vector.load %arg2[%c0_1, %c0_2] : memref<128x192xf32, #tpu.memory_space<vmem>>, vector<128x192xf32>
    %cst = arith.constant dense<0.000000e+00> : vector<8x192xf32>
    %2 = tpu.matmul %0, %1, %cst {dimension_numbers = #tpu.dot_dimension_numbers<[1], [0], [0], [1], [0, 0, 1, 1], [], []>} : vector<8x128xf32>, vector<128x192xf32>, vector<8x192xf32> -> vector<8x192xf32>
    %c0_3 = arith.constant 0 : index
    %c0_4 = arith.constant 0 : index
    %3 = vector.load %arg5[%c0_3, %c0_4] : memref<3x192xf32, #tpu.memory_space<vmem>>, vector<1x192xf32>
    %4 = vector.broadcast %3 : vector<1x192xf32> to vector<8x192xf32>
    %5 = arith.addf %2, %4 : vector<8x192xf32>
    %cst_5 = arith.constant 0.000000e+00 : f32
    %6 = vector.broadcast %cst_5 : f32 to vector<8x192xf32>
    %7 = arith.maximumf %5, %6 : vector<8x192xf32>
    %c0_6 = arith.constant 0 : index
    %c0_7 = arith.constant 0 : index
    %8 = vector.load %arg3[%c0_6, %c0_7] : memref<192x48xf32, #tpu.memory_space<vmem>>, vector<192x48xf32>
    %cst_8 = arith.constant dense<0.000000e+00> : vector<8x48xf32>
    %9 = tpu.matmul %7, %8, %cst_8 {dimension_numbers = #tpu.dot_dimension_numbers<[1], [0], [0], [1], [0, 0, 1, 1], [], []>} : vector<8x192xf32>, vector<192x48xf32>, vector<8x48xf32> -> vector<8x48xf32>
    %c1 = arith.constant 1 : index
    %c0_9 = arith.constant 0 : index
    %10 = vector.load %arg5[%c1, %c0_9] : memref<3x192xf32, #tpu.memory_space<vmem>>, vector<1x48xf32>
    %11 = vector.broadcast %10 : vector<1x48xf32> to vector<8x48xf32>
    %12 = arith.addf %9, %11 : vector<8x48xf32>
    %cst_10 = arith.constant 0.000000e+00 : f32
    %13 = vector.broadcast %cst_10 : f32 to vector<8x48xf32>
    %14 = arith.maximumf %12, %13 : vector<8x48xf32>
    %c0_11 = arith.constant 0 : index
    %c0_12 = arith.constant 0 : index
    %15 = vector.load %arg4[%c0_11, %c0_12] : memref<48x16xf32, #tpu.memory_space<vmem>>, vector<48x16xf32>
    %cst_13 = arith.constant dense<0.000000e+00> : vector<8x16xf32>
    %16 = tpu.matmul %14, %15, %cst_13 {dimension_numbers = #tpu.dot_dimension_numbers<[1], [0], [0], [1], [0, 0, 1, 1], [], []>} : vector<8x48xf32>, vector<48x16xf32>, vector<8x16xf32> -> vector<8x16xf32>
    %c2 = arith.constant 2 : index
    %c0_14 = arith.constant 0 : index
    %17 = vector.load %arg5[%c2, %c0_14] : memref<3x192xf32, #tpu.memory_space<vmem>>, vector<1x16xf32>
    %18 = vector.broadcast %17 : vector<1x16xf32> to vector<8x16xf32>
    %19 = arith.addf %16, %18 : vector<8x16xf32>
    %20 = tpu.iota {dimensions = array<i32: 1>} : vector<8x16xi32>
    %c0_i32 = arith.constant 0 : i32
    %21 = vector.broadcast %c0_i32 : i32 to vector<8x16xi32>
    %22 = arith.cmpi eq, %20, %21 : vector<8x16xi32>
    %23 = arith.negf %19 : vector<8x16xf32>
    %24 = math.exp %23 : vector<8x16xf32>
    %cst_15 = arith.constant 1.000000e+00 : f32
    %25 = vector.broadcast %cst_15 : f32 to vector<8x16xf32>
    %26 = arith.addf %25, %24 : vector<8x16xf32>
    %27 = arith.divf %25, %26 : vector<8x16xf32>
    %28 = arith.select %22, %27, %19 : vector<8x16xi1>, vector<8x16xf32>
    %c0_16 = arith.constant 0 : index
    %c0_17 = arith.constant 0 : index
    %29 = vector.load %arg6[%c0_16, %c0_17] : memref<8x16xf32, #tpu.memory_space<vmem>>, vector<8x16xf32>
    tpu.vector_store %arg6[%c0_16, %c0_17], %28 {strides = array<i32>} : memref<8x16xf32, #tpu.memory_space<vmem>>, vector<8x16xf32>,
    return
  }
  func.func @transform_0(%arg0: i32) -> (i32, i32) {
    %c0_i32 = arith.constant 0 : i32
    %c0_i32_0 = arith.constant 0 : i32
    return %arg0, %c0_i32 : i32, i32
  }
  func.func @transform_1(%arg0: i32) -> (i32, i32) {
    %c0_i32 = arith.constant 0 : i32
    %c0_i32_0 = arith.constant 0 : i32
    %c0_i32_1 = arith.constant 0 : i32
    return %c0_i32, %c0_i32_0 : i32, i32
  }
  func.func @transform_2(%arg0: i32) -> (i32, i32) {
    %c0_i32 = arith.constant 0 : i32
    %c0_i32_0 = arith.constant 0 : i32
    %c0_i32_1 = arith.constant 0 : i32
    return %c0_i32, %c0_i32_0 : i32, i32
  }
  func.func @transform_3(%arg0: i32) -> (i32, i32) {
    %c0_i32 = arith.constant 0 : i32
    %c0_i32_0 = arith.constant 0 : i32
    %c0_i32_1 = arith.constant 0 : i32
    return %c0_i32, %c0_i32_0 : i32, i32
  }
  func.func @transform_4(%arg0: i32) -> (i32, i32) {
    %c0_i32 = arith.constant 0 : i32
    %c0_i32_0 = arith.constant 0 : i32
    %c0_i32_1 = arith.constant 0 : i32
    return %c0_i32, %c0_i32_0 : i32, i32
  }
  func.func @transform_5(%arg0: i32) -> (i32, i32) {
    %c0_i32 = arith.constant 0 : i32
    %c0_i32_0 = arith.constant 0 : i32
    return %arg0, %c0_i32 : i32, i32
  }
}

</mosaic_0001>

<llo_original>
// kernel: tpu_custom_call.1
$region0: #{tpu_custom_call.1}
  #allocation0 [shape = 'u32[]', space=smem, size = 0x4, offset = 0x4, fixed_abs, tag = 'smem constant byte address 0x4 - core index']
  #allocation1 [shape = 'u32[144,128]{1,0:T(1,128)}', space=vmem, size = 0x12000, scoped, tag = 'internal scratch']
  %s0 = inlined_call_operand.vmem [shape: f32[8,128], index: 0, kind: input, shape index: {}]
  %s1 = inlined_call_operand.vmem [shape: f32[128,192], index: 1, kind: input, shape index: {}]
  %s2 = inlined_call_operand.vmem [shape: f32[192,48], index: 2, kind: input, shape index: {}]
  %s3 = inlined_call_operand.vmem [shape: f32[48,16], index: 3, kind: input, shape index: {}]
  %s4 = inlined_call_operand.vmem [shape: f32[3,192], index: 4, kind: input, shape index: {}]
  %s5 = inlined_call_operand.hbm [shape: f32[8,16], index: 5, kind: output, shape index: {}]
  %s6 = sld [smem:[#allocation0]]
  $region30: #{tpu_custom_call.1} parent=0
    _
  %s8 = ssub.s32 1, %s6
  %s9 = scalar_select 0, %s8, %s6
  $region1: #{tpu_custom_call.1} parent=0
    #allocation2 [shape = 'u8[4096]{0}', space=vmem, size = 0x1000, scoped, tag = 'output window, operand 0, single buffered']
    #allocation3 [shape = 's32[1]{0}', space=sflag, size = 0x4, scoped, tag = 'scoped memory for tpu_custom_call.1']
    %10 = vsyncpa [#allocation3], 0
    // Predicated region
    $region2: #{tpu_custom_call.1} parent=1 // pred_check
      _
    $region3: #{tpu_custom_call.1} parent=1 // pred_check_branch
      %12 = sbr.rel (0) target = $region5
    $region4: #{tpu_custom_call.1} parent=1 // pred_region
      _
    $region5: #{tpu_custom_call.1} parent=1 // pred_fallthru
      _
    // Predicated region
    $region6: #{tpu_custom_call.1} parent=1 // pred_check
      _
    $region7: #{tpu_custom_call.1} parent=1 // pred_check_branch
      %14 = sbr.rel (0) target = $region9
    $region8: #{tpu_custom_call.1} parent=1 // pred_region
      _
    $region9: #{tpu_custom_call.1} parent=1 // pred_fallthru
      _
    // Predicated region
    $region10: #{tpu_custom_call.1} parent=1 // pred_check
      _
    $region11: #{tpu_custom_call.1} parent=1 // pred_check_branch
      %16 = sbr.rel (0) target = $region13
    $region12: #{tpu_custom_call.1} parent=1 // pred_region
      _
    $region13: #{tpu_custom_call.1} parent=1 // pred_fallthru
      _
    // Predicated region
    $region14: #{tpu_custom_call.1} parent=1 // pred_check
      _
    $region15: #{tpu_custom_call.1} parent=1 // pred_check_branch
      %18 = sbr.rel (0) target = $region17
    $region16: #{tpu_custom_call.1} parent=1 // pred_region
      _
    $region17: #{tpu_custom_call.1} parent=1 // pred_fallthru
      _
    // Predicated region
    $region18: #{tpu_custom_call.1} parent=1 // pred_check
      _
    $region19: #{tpu_custom_call.1} parent=1 // pred_check_branch
      %20 = sbr.rel (0) target = $region21
    $region20: #{tpu_custom_call.1} parent=1 // pred_region
      _
    $region21: #{tpu_custom_call.1} parent=1 // pred_fallthru
      _
    %v21 = vld [vmem:[%s0] sm:$0xff]
    %v22 = vld [vmem:[%s1] sm:$0xff]
    %v23 = vld [vmem:[%s1 + $0x8] sm:$0xff]
    %v24 = vld [vmem:[%s1 + $0x10] sm:$0xff]
    %v25 = vld [vmem:[%s1 + $0x18] sm:$0xff]
    %v26 = vld [vmem:[%s1 + $0x20] sm:$0xff]
    %v27 = vld [vmem:[%s1 + $0x28] sm:$0xff]
    %v28 = vld [vmem:[%s1 + $0x30] sm:$0xff]
    %v29 = vld [vmem:[%s1 + $0x38] sm:$0xff]
    %v30 = vld [vmem:[%s1 + $0x40] sm:$0xff]
    %v31 = vld [vmem:[%s1 + $0x48] sm:$0xff]
    %v32 = vld [vmem:[%s1 + $0x50] sm:$0xff]
    %v33 = vld [vmem:[%s1 + $0x58] sm:$0xff]
    %v34 = vld [vmem:[%s1 + $0x60] sm:$0xff]
    %v35 = vld [vmem:[%s1 + $0x68] sm:$0xff]
    %v36 = vld [vmem:[%s1 + $0x70] sm:$0xff]
    %v37 = vld [vmem:[%s1 + $0x78] sm:$0xff]
    %v38 = vld [vmem:[%s1 + $0x80] sm:$0xff]
    %v39 = vld [vmem:[%s1 + $0x88] sm:$0xff]
    %v40 = vld [vmem:[%s1 + $0x90] sm:$0xff]
    %v41 = vld [vmem:[%s1 + $0x98] sm:$0xff]
    %v42 = vld [vmem:[%s1 + $0xa0] sm:$0xff]
    %v43 = vld [vmem:[%s1 + $0xa8] sm:$0xff]
    %v44 = vld [vmem:[%s1 + $0xb0] sm:$0xff]
    %v45 = vld [vmem:[%s1 + $0xb8] sm:$0xff]
    %v46 = vld [vmem:[%s1 + $0xc0] sm:$0xff]
    %v47 = vld [vmem:[%s1 + $0xc8] sm:$0xff]
    %v48 = vld [vmem:[%s1 + $0xd0] sm:$0xff]
    %v49 = vld [vmem:[%s1 + $0xd8] sm:$0xff]
    %v50 = vld [vmem:[%s1 + $0xe0] sm:$0xff]
    %v51 = vld [vmem:[%s1 + $0xe8] sm:$0xff]
    %v52 = vld [vmem:[%s1 + $0xf0] sm:$0xff]
    %v53 = vld [vmem:[%s1 + $0xf8] sm:$0xff]
    %v54 = vld [vmem:[%s4] ss:$4 sm:$0x3]
    %v56 = vlaneseq
    %v57 = vshrl.u32 %v56, 7
    %v58 = vsub.s32 0, %v57
    %v59 = vrot.slane %v54, %v58
    %v60 = vlaneseq
    %v61 = vshrl.u32 %v60, 7
    %v62 = vsub.s32 1, %v61
    %v63 = vrot.slane %v54, %v62
    %66 = vmatprep.subr.mxu0 %v23
    %67 = vmatpush1.msra.mxu0 %v22
    %68 = vmatprep.subr.mxu0 %v25
    %69 = vmatpush1.msra.mxu0 %v24
    %70 = vmatprep.subr.mxu0 %v27
    %71 = vmatpush1.msra.mxu0 %v26
    %72 = vmatprep.subr.mxu0 %v29
    %73 = vmatpush1.msra.mxu0 %v28
    %74 = vmatprep.subr.mxu0 %v31
    %75 = vmatpush1.msra.mxu0 %v30
    %76 = vmatprep.subr.mxu0 %v33
    %77 = vmatpush1.msra.mxu0 %v32
    %78 = vmatprep.subr.mxu0 %v35
    %79 = vmatpush1.msra.mxu0 %v34
    %80 = vmatprep.subr.mxu0 %v37
    %81 = vmatpush1.msra.mxu0 %v36
    %82 = vmatprep.subr.mxu0 %v39
    %83 = vmatpush1.msra.mxu0 %v38
    %84 = vmatprep.subr.mxu0 %v41
    %85 = vmatpush1.msra.mxu0 %v40
    %86 = vmatprep.subr.mxu0 %v43
    %87 = vmatpush1.msra.mxu0 %v42
    %88 = vmatprep.subr.mxu0 %v45
    %89 = vmatpush1.msra.mxu0 %v44
    %90 = vmatprep.subr.mxu0 %v47
    %91 = vmatpush1.msra.mxu0 %v46
    %92 = vmatprep.subr.mxu0 %v49
    %93 = vmatpush1.msra.mxu0 %v48
    %94 = vmatprep.subr.mxu0 %v51
    %95 = vmatpush1.msra.mxu0 %v50
    %96 = vmatprep.subr.mxu0 %v53
    %97 = vmatpush1.msra.mxu0 %v52
    %98 = vmatprep.subr.mxu0 0.0
    %99 = vmatpush1.msra.mxu0 0.0
    %100 = vmatprep.subr.mxu0 0.0
    %101 = vmatpush1.msra.mxu0 0.0
    %102 = vmatprep.subr.mxu0 0.0
    %103 = vmatpush1.msra.mxu0 0.0
    %104 = vmatprep.subr.mxu0 0.0
    %105 = vmatpush1.msra.mxu0 0.0
    %106 = vmatprep.subr.mxu0 0.0
    %107 = vmatpush1.msra.mxu0 0.0
    %108 = vmatprep.subr.mxu0 0.0
    %109 = vmatpush1.msra.mxu0 0.0
    %110 = vmatprep.subr.mxu0 0.0
    %111 = vmatpush1.msra.mxu0 0.0
    %112 = vmatprep.subr.mxu0 0.0
    %113 = vmatpush1.msra.mxu0 0.0
    %114 = vmatprep.subr.mxu0 0.0
    %115 = vmatpush1.msra.mxu0 0.0
    %116 = vmatprep.subr.mxu0 0.0
    %117 = vmatpush1.msra.mxu0 0.0
    %118 = vmatprep.subr.mxu0 0.0
    %119 = vmatpush1.msra.mxu0 0.0
    %120 = vmatprep.subr.mxu0 0.0
    %121 = vmatpush1.msra.mxu0 0.0
    %122 = vmatprep.subr.mxu0 0.0
    %123 = vmatpush1.msra.mxu0 0.0
    %124 = vmatprep.subr.mxu0 0.0
    %125 = vmatpush1.msra.mxu0 0.0
    %126 = vmatprep.subr.mxu0 0.0
    %127 = vmatpush1.msra.mxu0 0.0
    %128 = vmatprep.subr.mxu0 0.0
    %129 = vmatpush1.msra.mxu0 0.0
    %130 = vmatprep.mubr.f32.mxu0 0.0
    %131 = vmatmul.mubr.f32.gmra.mrb[0].mxu0 %v21
    %v132 = vpop.f32.mrb[0].mxu0
    %v133 = vadd.f32 %v59, %v132
    %v134 = vpop.f32.mrb[0].mxu0
    %v135 = vadd.f32 %v63, %v134
    %136 = vdwg.mxu0
    %v137 = vmax.f32 %v133, 0.0
    %v138 = vmax.f32 %v135, 0.0
    %v139 = vld [vmem:[%s2] sm:$0xff]
    %v140 = vld [vmem:[%s2 + $0x8] sm:$0xff]
    %v141 = vld [vmem:[%s2 + $0x10] sm:$0xff]
    %v142 = vld [vmem:[%s2 + $0x18] sm:$0xff]
    %v143 = vld [vmem:[%s2 + $0x20] sm:$0xff]
    %v144 = vld [vmem:[%s2 + $0x28] sm:$0xff]
    %v145 = vld [vmem:[%s2 + $0x30] sm:$0xff]
    %v146 = vld [vmem:[%s2 + $0x38] sm:$0xff]
    %v147 = vld [vmem:[%s2 + $0x40] sm:$0xff]
    %v148 = vld [vmem:[%s2 + $0x48] sm:$0xff]
    %v149 = vld [vmem:[%s2 + $0x50] sm:$0xff]
    %v150 = vld [vmem:[%s2 + $0x58] sm:$0xff]
    %v151 = vld [vmem:[%s2 + $0x60] sm:$0xff]
    %v152 = vld [vmem:[%s2 + $0x68] sm:$0xff]
    %v153 = vld [vmem:[%s2 + $0x70] sm:$0xff]
    %v154 = vld [vmem:[%s2 + $0x78] sm:$0xff]
    %v155 = vld [vmem:[%s2 + $0x80] sm:$0xff]
    %v156 = vld [vmem:[%s2 + $0x88] sm:$0xff]
    %v157 = vld [vmem:[%s2 + $0x90] sm:$0xff]
    %v158 = vld [vmem:[%s2 + $0x98] sm:$0xff]
    %v159 = vld [vmem:[%s2 + $0xa0] sm:$0xff]
    %v160 = vld [vmem:[%s2 + $0xa8] sm:$0xff]
    %v161 = vld [vmem:[%s2 + $0xb0] sm:$0xff]
    %v162 = vld [vmem:[%s2 + $0xb8] sm:$0xff]
    %v163 = vld [vmem:[%s4 + $0x1] sm:$0x1]
    %v164 = vlaneseq
    %v165 = vshrl.u32 %v164, 7
    %v166 = vsub.s32 0, %v165
    %v167 = vrot.slane %v163, %v166
    %vm168 = vcmask 523264
    %v170 = vsel %vm168, %v138, 0
    %172 = vmatprep.subr.mxu0 0.0
    %173 = vmatpush1.msra.mxu0 %v139
    %174 = vmatprep.subr.mxu0 0.0
    %175 = vmatpush1.msra.mxu0 %v140
    %176 = vmatprep.subr.mxu0 0.0
    %177 = vmatpush1.msra.mxu0 %v141
    %178 = vmatprep.subr.mxu0 0.0
    %179 = vmatpush1.msra.mxu0 %v142
    %180 = vmatprep.subr.mxu0 0.0
    %181 = vmatpush1.msra.mxu0 %v143
    %182 = vmatprep.subr.mxu0 0.0
    %183 = vmatpush1.msra.mxu0 %v144
    %184 = vmatprep.subr.mxu0 0.0
    %185 = vmatpush1.msra.mxu0 %v145
    %186 = vmatprep.subr.mxu0 0.0
    %187 = vmatpush1.msra.mxu0 %v146
    %188 = vmatprep.subr.mxu0 0.0
    %189 = vmatpush1.msra.mxu0 %v147
    %190 = vmatprep.subr.mxu0 0.0
    %191 = vmatpush1.msra.mxu0 %v148
    %192 = vmatprep.subr.mxu0 0.0
    %193 = vmatpush1.msra.mxu0 %v149
    %194 = vmatprep.subr.mxu0 0.0
    %195 = vmatpush1.msra.mxu0 %v150
    %196 = vmatprep.subr.mxu0 0.0
    %197 = vmatpush1.msra.mxu0 %v151
    %198 = vmatprep.subr.mxu0 0.0
    %199 = vmatpush1.msra.mxu0 %v152
    %200 = vmatprep.subr.mxu0 0.0
    %201 = vmatpush1.msra.mxu0 %v153
    %202 = vmatprep.subr.mxu0 0.0
    %203 = vmatpush1.msra.mxu0 %v154
    %204 = vmatprep.subr.mxu0 0.0
    %205 = vmatpush1.msra.mxu0 %v155
    %206 = vmatprep.subr.mxu0 0.0
    %207 = vmatpush1.msra.mxu0 %v156
    %208 = vmatprep.subr.mxu0 0.0
    %209 = vmatpush1.msra.mxu0 %v157
    %210 = vmatprep.subr.mxu0 0.0
    %211 = vmatpush1.msra.mxu0 %v158
    %212 = vmatprep.subr.mxu0 0.0
    %213 = vmatpush1.msra.mxu0 %v159
    %214 = vmatprep.subr.mxu0 0.0
    %215 = vmatpush1.msra.mxu0 %v160
    %216 = vmatprep.subr.mxu0 0.0
    %217 = vmatpush1.msra.mxu0 %v161
    %218 = vmatprep.subr.mxu0 0.0
    %219 = vmatpush1.msra.mxu0 %v162
    %220 = vmatprep.subr.mxu0 0.0
    %221 = vmatpush1.msra.mxu0 0.0
    %222 = vmatprep.subr.mxu0 0.0
    %223 = vmatpush1.msra.mxu0 0.0
    %224 = vmatprep.subr.mxu0 0.0
    %225 = vmatpush1.msra.mxu0 0.0
    %226 = vmatprep.subr.mxu0 0.0
    %227 = vmatpush1.msra.mxu0 0.0
    %228 = vmatprep.subr.mxu0 0.0
    %229 = vmatpush1.msra.mxu0 0.0
    %230 = vmatprep.subr.mxu0 0.0
    %231 = vmatpush1.msra.mxu0 0.0
    %232 = vmatprep.subr.mxu0 0.0
    %233 = vmatpush1.msra.mxu0 0.0
    %234 = vmatprep.subr.mxu0 0.0
    %235 = vmatpush1.msra.mxu0 0.0
    %236 = vmatprep.mubr.f32.mxu0 %v170
    %237 = vmatmul.mubr.f32.gmra.mrb[0].mxu0 %v137
    %v238 = vpop.f32.mrb[0].mxu0
    %v239 = vadd.f32 %v167, %v238
    %v240 = vpop.f32.mrb[0].mxu0
    %241 = vdwg.mxu0
    %v242 = vmax.f32 %v239, 0.0
    %v243 = vld [vmem:[%s3] sm:$0xff]
    %v244 = vld [vmem:[%s3 + $0x8] sm:$0xff]
    %v245 = vld [vmem:[%s3 + $0x10] sm:$0xff]
    %v246 = vld [vmem:[%s3 + $0x18] sm:$0xff]
    %v247 = vld [vmem:[%s3 + $0x20] sm:$0xff]
    %v248 = vld [vmem:[%s3 + $0x28] sm:$0xff]
    %v249 = vld [vmem:[%s4 + $0x2] sm:$0x1]
    %v250 = vlaneseq
    %v251 = vshrl.u32 %v250, 7
    %v252 = vsub.s32 0, %v251
    %v253 = vrot.slane %v249, %v252
    %vm254 = vcmask 392192
    %v256 = vsel %vm254, %v242, 0
    %258 = vmatprep.subr.mxu0 0.0
    %259 = vmatpush1.msra.mxu0 %v243
    %260 = vmatprep.subr.mxu0 0.0
    %261 = vmatpush1.msra.mxu0 %v244
    %262 = vmatprep.subr.mxu0 0.0
    %263 = vmatpush1.msra.mxu0 %v245
    %264 = vmatprep.subr.mxu0 0.0
    %265 = vmatpush1.msra.mxu0 %v246
    %266 = vmatprep.subr.mxu0 0.0
    %267 = vmatpush1.msra.mxu0 %v247
    %268 = vmatprep.subr.mxu0 0.0
    %269 = vmatpush1.msra.mxu0 %v248
    %270 = vmatprep.subr.mxu0 0.0
    %271 = vmatpush1.msra.mxu0 0.0
    %272 = vmatprep.subr.mxu0 0.0
    %273 = vmatpush1.msra.mxu0 0.0
    %274 = vmatprep.subr.mxu0 0.0
    %275 = vmatpush1.msra.mxu0 0.0
    %276 = vmatprep.subr.mxu0 0.0
    %277 = vmatpush1.msra.mxu0 0.0
    %278 = vmatprep.subr.mxu0 0.0
    %279 = vmatpush1.msra.mxu0 0.0
    %280 = vmatprep.subr.mxu0 0.0
    %281 = vmatpush1.msra.mxu0 0.0
    %282 = vmatprep.subr.mxu0 0.0
    %283 = vmatpush1.msra.mxu0 0.0
    %284 = vmatprep.subr.mxu0 0.0
    %285 = vmatpush1.msra.mxu0 0.0
    %286 = vmatprep.subr.mxu0 0.0
    %287 = vmatpush1.msra.mxu0 0.0
    %288 = vmatprep.subr.mxu0 0.0
    %289 = vmatpush1.msra.mxu0 0.0
    %290 = vmatprep.subr.mxu0 0.0
    %291 = vmatpush1.msra.mxu0 0.0
    %292 = vmatprep.subr.mxu0 0.0
    %293 = vmatpush1.msra.mxu0 0.0
    %294 = vmatprep.subr.mxu0 0.0
    %295 = vmatpush1.msra.mxu0 0.0
    %296 = vmatprep.subr.mxu0 0.0
    %297 = vmatpush1.msra.mxu0 0.0
    %298 = vmatprep.subr.mxu0 0.0
    %299 = vmatpush1.msra.mxu0 0.0
    %300 = vmatprep.subr.mxu0 0.0
    %301 = vmatpush1.msra.mxu0 0.0
    %302 = vmatprep.subr.mxu0 0.0
    %303 = vmatpush1.msra.mxu0 0.0
    %304 = vmatprep.subr.mxu0 0.0
    %305 = vmatpush1.msra.mxu0 0.0
    %306 = vmatprep.subr.mxu0 0.0
    %307 = vmatpush1.msra.mxu0 0.0
    %308 = vmatprep.subr.mxu0 0.0
    %309 = vmatpush1.msra.mxu0 0.0
    %310 = vmatprep.subr.mxu0 0.0
    %311 = vmatpush1.msra.mxu0 0.0
    %312 = vmatprep.subr.mxu0 0.0
    %313 = vmatpush1.msra.mxu0 0.0
    %314 = vmatprep.subr.mxu0 0.0
    %315 = vmatpush1.msra.mxu0 0.0
    %316 = vmatprep.subr.mxu0 0.0
    %317 = vmatpush1.msra.mxu0 0.0
    %318 = vmatprep.subr.mxu0 0.0
    %319 = vmatpush1.msra.mxu0 0.0
    %320 = vmatprep.subr.mxu0 0.0
    %321 = vmatpush1.msra.mxu0 0.0
    %322 = vmatprep.mubr.f32.mxu0 0.0
    %323 = vmatmul.mubr.f32.gmra.mrb[0].mxu0 %v256
    %v324 = vpop.f32.mrb[0].mxu0
    %v325 = vadd.f32 %v253, %v324
    %v326 = vpop.f32.mrb[0].mxu0
    %327 = vdwg.mxu0
    %v328 = vlaneseq
    %v329 = vand.u32 %v328, 127
    %vm330 = vcmp.eq.s32.totalorder %v329, 0
    %v331 = vxor.u32 %v325, 2147483648
    %v332 = vmul.f32 %v331, 1.442695
    %v333 = vpow.pop %v332
    %v334 = vadd.f32 %v333, 1.0
    %v335 = vrcp.pop %v334
    %v336 = vmul.f32 1.0, %v335
    %v337 = vsel %vm330, %v336, %v325
    %vm338 = vcmask 130048
    %339 = vst.msk [vmem:[#allocation2] sm:$0xff] %vm338, %v337
    // Predicated region
    $region22: #{tpu_custom_call.1} parent=1 // pred_check
      _
    $region23: #{tpu_custom_call.1} parent=1 // pred_check_branch
      %341 = sbr.rel (0) target = $region25
    $region24: #{tpu_custom_call.1} parent=1 // pred_region
      %s343 = ssub.s32 128, 128
      %344 = vsyncadd [#allocation3], %s343
      %s346 = sshll.u32 [#allocation2], 4
      %s347 = int_to_ptr.vmem [resolvable:$true] %s346
      %349 = dma.vmem_to_hbm [thread:$0]  %s347, 128, %s5, [#allocation3]
    $region25: #{tpu_custom_call.1} parent=1 // pred_fallthru
      _
    // Predicated region
    $region26: #{tpu_custom_call.1} parent=1 // pred_check
      _
    $region27: #{tpu_custom_call.1} parent=1 // pred_check_branch
      %351 = sbr.rel (0) target = $region29
    $region28: #{tpu_custom_call.1} parent=1 // pred_region
      %352 = dma.done [#allocation3], 128
    $region29: #{tpu_custom_call.1} parent=1 // pred_fallthru
      _
    %353 = vsyncpa [#allocation3], 1

</llo_original>
